<compile_context>
chip_gen: v7x
topology: tpu7x:2x2x1
jax: 0.10.0
libtpu: 0.0.40
codegen_flags: <defaults>
</compile_context>

<pallas_src>
import functools

import jax
import jax.numpy as jnp
from jax.experimental import pallas as pl
from jax.experimental.pallas import tpu as pltpu

LANES = 128
SUBLANES = 8
CHUNK_ROWS = 1024                       # in-kernel compute tile (512 KiB f32)
TARGET_BLOCK_BYTES = 4 * 1024 * 1024    # ~4 MiB of DMA per input per grid step
VMEM_LIMIT_BYTES = 32 * 1024 * 1024     # <= physical VMEM on v5e/v6e/v7x


def _l1_mean_kernel(o_ref, t_ref, out_ref, acc_ref, *,
                    rows_total, row_block, chunk_rows, n_chunks,
                    blocks_per_shard, n_blocks, has_phantom, need_mask, inv_n):
    c = pl.program_id(0)                  # shard (TensorCore) index
    k = pl.program_id(1)                  # block index within the shard
    gb = c * blocks_per_shard + k         # global (unclamped) block index

    @pl.when(k == 0)
    def _init():
        acc_ref[...] = jnp.zeros_like(acc_ref)

    def accumulate(mask_rows):
        # Static (trace-time) loop over fixed-size chunks keeps f32
        # intermediates small regardless of the DMA block size; each chunk is
        # folded into the tiny (8,128) accumulator with leading-axis VPU adds.
        for j in range(n_chunks):
            o_c = o_ref[pl.ds(j * chunk_rows, chunk_rows), :].astype(jnp.float32)
            t_c = t_ref[pl.ds(j * chunk_rows, chunk_rows), :].astype(jnp.float32)
            d = jnp.abs(t_c - o_c)
            if mask_rows:
                row_ids = (gb * row_block + j * chunk_rows
                           + jax.lax.broadcasted_iota(jnp.int32, d.shape, 0))
                # True select (not multiply) so stale NaN/Inf in the
                # overhanging rows of the last block is dropped.
                d = jnp.where(row_ids < rows_total, d, 0.0)
            acc_ref[...] += d.reshape(chunk_rows // SUBLANES, SUBLANES,
                                      LANES).sum(axis=0)

    last_real = n_blocks - 1
    if not (need_mask or has_phantom):
        accumulate(False)
    elif n_blocks == 1 and not has_phantom:
        accumulate(True)
    else:
        @pl.when(gb < last_real)
        def _bulk():
            accumulate(False)

        @pl.when(gb == last_real)
        def _last():
            accumulate(need_mask)
        # gb > last_real: phantom (clamped duplicate) block -> skip entirely.

    @pl.when(k == blocks_per_shard - 1)
    def _finalize():
        # Single cross-lane/cross-sublane reduce + folded mean (x 1/N).
        total = jnp.sum(acc_ref[...], keepdims=True) * inv_n   # (1, 1)
        out_ref[...] = total.reshape(1, 1, 1)


def _round_up(x, m):
    return ((x + m - 1) // m) * m


def _sublane_multiple(dtype):
    # Sub-32-bit dtypes pack along sublanes; keep block rows a multiple of
    # the packed native tile height.
    bits = jnp.dtype(dtype).itemsize * 8
    return SUBLANES * max(1, 32 // bits)


def _default_num_shards(n_blocks):
    # Use both TensorCores when the chip has more than one (v7x) and there is
    # enough work to split.  Best-effort detection; falls back to 1 shard.
    # TODO(synk): replace the getattr probe with a proper chip-version query.
    if n_blocks < 8:
        return 1
    try:
        n_cores = int(getattr(jax.devices()[0], "num_cores", 1) or 1)
    except Exception:
        n_cores = 1
    return 2 if n_cores > 1 else 1


def l1_loss(outputs, targets, num_shards=None):
    """Pallas TPU implementation of torch.abs(targets - outputs).mean()."""
    assert outputs.shape == targets.shape, "inputs must have the same shape"
    n_elems = int(outputs.size)
    assert n_elems > 0

    # Keep f32/bf16/f16 native (in-kernel f32 cast); anything else -> f32.
    # TODO(synk): float64 inputs are reduced in f32, unlike torch double.
    if outputs.dtype not in (jnp.float32, jnp.bfloat16, jnp.float16):
        outputs = outputs.astype(jnp.float32)
        targets = targets.astype(jnp.float32)

    o_flat = outputs.reshape(-1)
    t_flat = targets.reshape(-1)
    inv_n = 1.0 / n_elems

    # 128-aligned prefix goes through the kernel; the (<128-element) tail is a
    # tiny jnp reduction (no jnp.pad -> no full HBM copy of the inputs).
    n_main = (n_elems // LANES) * LANES
    if n_main == 0:
        return jnp.mean(jnp.abs(t_flat.astype(jnp.float32) -
                                o_flat.astype(jnp.float32)))

    tail_mean = None
    if n_main != n_elems:
        tail_mean = jnp.sum(jnp.abs(t_flat[n_main:].astype(jnp.float32) -
                                    o_flat[n_main:].astype(jnp.float32))) * inv_n

    rows = n_main // LANES
    o2d = o_flat[:n_main].reshape(rows, LANES)
    t2d = t_flat[:n_main].reshape(rows, LANES)

    itemsize = jnp.dtype(o2d.dtype).itemsize
    sub_mult = _sublane_multiple(o2d.dtype)

    # Constant-byte DMA blocks: ~TARGET_BLOCK_BYTES per input per grid step.
    cap_rows = max(CHUNK_ROWS, TARGET_BLOCK_BYTES // (LANES * itemsize))
    if rows >= cap_rows:
        row_block = cap_rows
    elif rows <= CHUNK_ROWS:
        row_block = _round_up(rows, sub_mult)
    else:
        row_block = _round_up(rows, CHUNK_ROWS)
    chunk_rows = min(CHUNK_ROWS, row_block)
    n_chunks = row_block // chunk_rows
    assert row_block % chunk_rows == 0 and chunk_rows % SUBLANES == 0

    n_blocks = (rows + row_block - 1) // row_block
    need_mask = (rows % row_block) != 0

    if num_shards is None:
        num_shards = _default_num_shards(n_blocks)
    num_shards = max(1, min(int(num_shards), n_blocks))
    bps = (n_blocks + num_shards - 1) // num_shards
    has_phantom = num_shards * bps > n_blocks

    if has_phantom:
        def in_map(c, k):
            return (jnp.minimum(c * bps + k, n_blocks - 1), 0)
    else:
        def in_map(c, k):
            return (c * bps + k, 0)

    kernel = functools.partial(
        _l1_mean_kernel,
        rows_total=rows, row_block=row_block, chunk_rows=chunk_rows,
        n_chunks=n_chunks, blocks_per_shard=bps, n_blocks=n_blocks,
        has_phantom=has_phantom, need_mask=need_mask, inv_n=inv_n)

    cost = pl.CostEstimate(flops=3 * n_main, transcendentals=0,
                           bytes_accessed=2 * n_main * itemsize + 4 * num_shards)

    out = pl.pallas_call(
        kernel,
        out_shape=jax.ShapeDtypeStruct((num_shards, 1, 1), jnp.float32),
        grid_spec=pltpu.PrefetchScalarGridSpec(
            num_scalar_prefetch=0,
            grid=(num_shards, bps),
            in_specs=[pl.BlockSpec((row_block, LANES), in_map),
                      pl.BlockSpec((row_block, LANES), in_map)],
            out_specs=pl.BlockSpec((1, 1, 1), lambda c, k: (c, 0, 0)),
            scratch_shapes=[pltpu.VMEM((SUBLANES, LANES), jnp.float32)],
        ),
        compiler_params=pltpu.CompilerParams(
            dimension_semantics=("parallel", "arbitrary"),
            vmem_limit_bytes=VMEM_LIMIT_BYTES,
        ),
        cost_estimate=cost,
    )(o2d, t2d)

    loss = jnp.sum(out)                   # per-shard partial means (already /N)
    if tail_mean is not None:
        loss = loss + tail_mean
    return loss


if __name__ == "__main__":
    key = jax.random.PRNGKey(0)
    k1, k2, k3, k4, k5, k6 = jax.random.split(key, 6)

    # 1) Small NCHW image-regression shape, f32.
    outputs = jax.random.normal(k1, (2, 4, 16, 16), dtype=jnp.float32)
    targets = jax.random.normal(k2, (2, 4, 16, 16), dtype=jnp.float32)
    loss = l1_loss(outputs, targets)
    jax.block_until_ready(loss)
    ref = jnp.mean(jnp.abs(targets - outputs))
    assert jnp.allclose(loss, ref, rtol=1e-6, atol=1e-6), (loss, ref)

    # 2) bf16 path (native-dtype DMA, in-kernel f32 accumulation).
    o_bf16 = outputs.astype(jnp.bfloat16)
    t_bf16 = targets.astype(jnp.bfloat16)
    loss_bf16 = l1_loss(o_bf16, t_bf16)
    jax.block_until_ready(loss_bf16)
    ref_bf16 = jnp.mean(jnp.abs(t_bf16.astype(jnp.float32) -
                                o_bf16.astype(jnp.float32)))
    assert jnp.allclose(loss_bf16, ref_bf16, rtol=1e-2, atol=1e-2), (
        loss_bf16, ref_bf16)

    # 3) Non-128-aligned element count: exercises the jnp tail path and the
    #    pl.when-gated row mask of the overhanging block.
    o3 = jax.random.normal(k3, (3, 5, 7, 11), dtype=jnp.float32)
    t3 = jax.random.normal(k4, (3, 5, 7, 11), dtype=jnp.float32)
    loss3 = l1_loss(o3, t3)
    jax.block_until_ready(loss3)
    ref3 = jnp.mean(jnp.abs(t3 - o3))
    assert jnp.allclose(loss3, ref3, rtol=1e-5, atol=1e-6), (loss3, ref3)

    # 4) Large input with an explicit 2-way TensorCore split (odd block count
    #    -> exercises the clamped index_map / phantom-block skip) plus a tail.
    n_big = 3 * 8192 * LANES + 77
    o4 = jax.random.normal(k5, (n_big,), dtype=jnp.float32)
    t4 = jax.random.normal(k6, (n_big,), dtype=jnp.float32)
    loss4 = l1_loss(o4, t4, num_shards=2)
    jax.block_until_ready(loss4)
    ref4 = jnp.mean(jnp.abs(t4 - o4))
    assert jnp.allclose(loss4, ref4, rtol=1e-4, atol=1e-6), (loss4, ref4)

    print("KERNEL_OK")
</pallas_src>

<mosaic_0001>
module attributes {stable_mosaic.version = 11 : i64} {
  func.func @_l1_mean_kernel(%arg0: i32, %arg1: i32, %arg2: memref<16x128xf32, #tpu.memory_space<vmem>>, %arg3: memref<16x128xf32, #tpu.memory_space<vmem>>, %arg4: memref<1x1x1xf32, #tpu.memory_space<vmem>>, %arg5: memref<8x128xf32, #tpu.memory_space<vmem>>) attributes {dimension_semantics = [#tpu.dimension_semantics<parallel>, #tpu.dimension_semantics<arbitrary>], iteration_bounds = array<i64: 1, 1>, scalar_prefetch = 0 : i64, scratch_operands = 1 : i64, tpu.core_type = #tpu.core_type<tc>, window_params = [{transform_indices = @transform_0, window_bounds = array<i64: 16, 128>}, {transform_indices = @transform_1, window_bounds = array<i64: 16, 128>}, {transform_indices = @transform_2, window_bounds = array<i64: 1, 1, 1>}]} {
    %c0_i32 = arith.constant 0 : i32
    %0 = arith.cmpi eq, %arg1, %c0_i32 : i32
    %1 = arith.extui %0 : i1 to i32
    %c0_i32_0 = arith.constant 0 : i32
    %2 = arith.cmpi ne, %1, %c0_i32_0 : i32
    scf.if %2 {
      %cst_10 = arith.constant 0.000000e+00 : f32
      %15 = vector.broadcast %cst_10 : f32 to vector<8x128xf32>
      %c0_11 = arith.constant 0 : index
      %c0_12 = arith.constant 0 : index
      %16 = vector.load %arg5[%c0_11, %c0_12] : memref<8x128xf32, #tpu.memory_space<vmem>>, vector<8x128xf32>
      tpu.vector_store %arg5[%c0_11, %c0_12], %15 {strides = array<i32>} : memref<8x128xf32, #tpu.memory_space<vmem>>, vector<8x128xf32>,
    } else {
    }
    %c0 = arith.constant 0 : index
    %c0_1 = arith.constant 0 : index
    %3 = vector.load %arg2[%c0, %c0_1] : memref<16x128xf32, #tpu.memory_space<vmem>>, vector<16x128xf32>
    %c0_2 = arith.constant 0 : index
    %c0_3 = arith.constant 0 : index
    %4 = vector.load %arg3[%c0_2, %c0_3] : memref<16x128xf32, #tpu.memory_space<vmem>>, vector<16x128xf32>
    %5 = arith.subf %4, %3 : vector<16x128xf32>
    %6 = math.absf %5 : vector<16x128xf32>
    %c0_4 = arith.constant 0 : index
    %c0_5 = arith.constant 0 : index
    %7 = vector.load %arg5[%c0_4, %c0_5] : memref<8x128xf32, #tpu.memory_space<vmem>>, vector<8x128xf32>
    %8 = vector.shape_cast %6 : vector<16x128xf32> to vector<2x8x128xf32>
    %cst = arith.constant dense<0.000000e+00> : vector<8x128xf32>
    %9 = vector.multi_reduction <add>, %8, %cst [0] : vector<2x8x128xf32> to vector<8x128xf32>
    %10 = arith.addf %7, %9 : vector<8x128xf32>
    %c0_6 = arith.constant 0 : index
    %c0_7 = arith.constant 0 : index
    %11 = vector.load %arg5[%c0_6, %c0_7] : memref<8x128xf32, #tpu.memory_space<vmem>>, vector<8x128xf32>
    tpu.vector_store %arg5[%c0_6, %c0_7], %10 {strides = array<i32>} : memref<8x128xf32, #tpu.memory_space<vmem>>, vector<8x128xf32>,
    %c0_i32_8 = arith.constant 0 : i32
    %12 = arith.cmpi eq, %arg1, %c0_i32_8 : i32
    %13 = arith.extui %12 : i1 to i32
    %c0_i32_9 = arith.constant 0 : i32
    %14 = arith.cmpi ne, %13, %c0_i32_9 : i32
    scf.if %14 {
      %c0_10 = arith.constant 0 : index
      %c0_11 = arith.constant 0 : index
      %15 = vector.load %arg5[%c0_10, %c0_11] : memref<8x128xf32, #tpu.memory_space<vmem>>, vector<8x128xf32>
      %16 = vector.shape_cast %15 : vector<8x128xf32> to vector<1x8x128xf32>
      %cst_12 = arith.constant dense<0.000000e+00> : vector<1xf32>
      %17 = vector.multi_reduction <add>, %16, %cst_12 [1, 2] : vector<1x8x128xf32> to vector<1xf32>
      %18 = vector.shape_cast %17 : vector<1xf32> to vector<1x1x1xf32>
      %19 = vector.extract %18[0, 0, 0] : f32 from vector<1x1x1xf32>
      %20 = vector.broadcast %19 : f32 to vector<1x1xf32>
      %cst_13 = arith.constant 4.8828125E-4 : f32
      %21 = vector.broadcast %cst_13 : f32 to vector<1x1xf32>
      %22 = arith.mulf %20, %21 : vector<1x1xf32>
      %23 = vector.shape_cast %22 : vector<1x1xf32> to vector<1x1x1xf32>
      %c0_14 = arith.constant 0 : index
      %c0_15 = arith.constant 0 : index
      %c0_16 = arith.constant 0 : index
      %24 = vector.load %arg4[%c0_14, %c0_15, %c0_16] : memref<1x1x1xf32, #tpu.memory_space<vmem>>, vector<1x1x1xf32>
      tpu.vector_store %arg4[%c0_14, %c0_15, %c0_16], %23 {strides = array<i32>} : memref<1x1x1xf32, #tpu.memory_space<vmem>>, vector<1x1x1xf32>,
    } else {
    }
    return
  }
  func.func @transform_0(%arg0: i32, %arg1: i32) -> (i32, i32) {
    %c1_i32 = arith.constant 1 : i32
    %0 = arith.muli %arg0, %c1_i32 : i32
    %1 = arith.addi %0, %arg1 : i32
    %c0_i32 = arith.constant 0 : i32
    %c0_i32_0 = arith.constant 0 : i32
    return %1, %c0_i32 : i32, i32
  }
  func.func @transform_1(%arg0: i32, %arg1: i32) -> (i32, i32) {
    %c1_i32 = arith.constant 1 : i32
    %0 = arith.muli %arg0, %c1_i32 : i32
    %1 = arith.addi %0, %arg1 : i32
    %c0_i32 = arith.constant 0 : i32
    %c0_i32_0 = arith.constant 0 : i32
    return %1, %c0_i32 : i32, i32
  }
  func.func @transform_2(%arg0: i32, %arg1: i32) -> (i32, i32, i32) {
    %c0_i32 = arith.constant 0 : i32
    %c0_i32_0 = arith.constant 0 : i32
    %c0_i32_1 = arith.constant 0 : i32
    return %arg0, %c0_i32, %c0_i32_0 : i32, i32, i32
  }
}

</mosaic_0001>

<llo_original>
// kernel: tpu_custom_call.1
$region0: #{tpu_custom_call.1}
  #allocation0 [shape = 'u32[]', space=smem, size = 0x4, offset = 0x4, fixed_abs, tag = 'smem constant byte address 0x4 - core index']
  #allocation1 [shape = 'u32[144,128]{1,0:T(1,128)}', space=vmem, size = 0x12000, scoped, tag = 'internal scratch']
  #allocation2 [shape = 'f32[8,128]{1,0:T(8,128)}', space=vmem, size = 0x1000, scoped, tag = 'scratch operand']
  %s0 = inlined_call_operand.hbm [shape: f32[16,128], index: 0, kind: input, shape index: {}]
  %s1 = inlined_call_operand.hbm [shape: f32[16,128], index: 1, kind: input, shape index: {}]
  %s2 = inlined_call_operand.hbm [shape: f32[1,1,1], index: 2, kind: output, shape index: {}]
  %s3 = sld [smem:[#allocation0]]
  $region34: #{tpu_custom_call.1} parent=0
    _
  %s5 = ssub.s32 1, %s3
  %s6 = scalar_select 0, %s5, %s3
  $region1: #{tpu_custom_call.1} parent=0
    #allocation3 [shape = 'u8[8192]{0}', space=vmem, size = 0x2000, scoped, tag = 'input window, operand 0, single buffered']
    #allocation4 [shape = 's32[1]{0}', space=sflag, size = 0x4, scoped, tag = 'scoped memory for tpu_custom_call.1']
    #allocation5 [shape = 's32[1]{0}', space=sflag, size = 0x4, scoped, tag = 'scoped memory for tpu_custom_call.1']
    #allocation6 [shape = 'u8[8192]{0}', space=vmem, size = 0x2000, scoped, tag = 'input window, operand 1, single buffered']
    #allocation7 [shape = 's32[1]{0}', space=sflag, size = 0x4, scoped, tag = 'scoped memory for tpu_custom_call.1']
    #allocation8 [shape = 'u8[512]{0}', space=vmem, size = 0x400, scoped, tag = 'output window, operand 0, single buffered']
    %7 = vsyncpa [#allocation4], 0
    %8 = vsyncpa [#allocation7], 0
    %9 = vsyncpa [#allocation5], 0
    // Predicated region
    $region2: #{tpu_custom_call.1} parent=1 // pred_check
      _
    $region3: #{tpu_custom_call.1} parent=1 // pred_check_branch
      %11 = sbr.rel (0) target = $region5
    $region4: #{tpu_custom_call.1} parent=1 // pred_region
      %s12 = sadd.s32 0, 0
      %s13 = smul.u32 2, %s12
      %s15 = ssub.s32 256, 256
      %16 = vsyncadd [#allocation4], %s15
      %s17 = smul.addr %s13, 128
      %s18 = scalar_lea.hbm %s0, %s17
      %s19 = sshll.u32 [#allocation3], 4
      %s20 = int_to_ptr.vmem [resolvable:$true] %s19
      %25 = dma.hbm_to_vmem [thread:$0]  %s18, 256, %s20, [#allocation4], 128, 128, 8
    $region5: #{tpu_custom_call.1} parent=1 // pred_fallthru
      _
    // Predicated region
    $region6: #{tpu_custom_call.1} parent=1 // pred_check
      _
    $region7: #{tpu_custom_call.1} parent=1 // pred_check_branch
      %27 = sbr.rel (0) target = $region9
    $region8: #{tpu_custom_call.1} parent=1 // pred_region
      %s28 = sadd.s32 0, 0
      %s29 = smul.u32 2, %s28
      %s31 = ssub.s32 256, 256
      %32 = vsyncadd [#allocation7], %s31
      %s33 = smul.addr %s29, 128
      %s34 = scalar_lea.hbm %s1, %s33
      %s35 = sshll.u32 [#allocation6], 4
      %s36 = int_to_ptr.vmem [resolvable:$true] %s35
      %41 = dma.hbm_to_vmem [thread:$0]  %s34, 256, %s36, [#allocation7], 128, 128, 8
    $region9: #{tpu_custom_call.1} parent=1 // pred_fallthru
      _
    // Predicated region
    $region10: #{tpu_custom_call.1} parent=1 // pred_check
      _
    $region11: #{tpu_custom_call.1} parent=1 // pred_check_branch
      %43 = sbr.rel (0) target = $region13
    $region12: #{tpu_custom_call.1} parent=1 // pred_region
      %44 = dma.done [#allocation4], 256
    $region13: #{tpu_custom_call.1} parent=1 // pred_fallthru
      _
    // Predicated region
    $region14: #{tpu_custom_call.1} parent=1 // pred_check
      _
    $region15: #{tpu_custom_call.1} parent=1 // pred_check_branch
      %46 = sbr.rel (0) target = $region17
    $region16: #{tpu_custom_call.1} parent=1 // pred_region
      %47 = dma.done [#allocation7], 256
    $region17: #{tpu_custom_call.1} parent=1 // pred_fallthru
      _
    %s48 = sadd.s32 0, 0
    %s49 = smul.u32 2, %s48
    %s50 = sadd.s32 0, 0
    %s51 = smul.u32 2, %s50
    %p52 = scmp.eq.s32.totalorder 0, 0
    // Predicated region
    $region18: #{tpu_custom_call.1} parent=1 // pred_check
      %p53 = pneg %p52
    $region19: #{tpu_custom_call.1} parent=1 // pred_check_branch
      %55 = sbr.rel (%p53) target = $region21
    $region20: #{tpu_custom_call.1} parent=1 // pred_region
      %56 = vst [vmem:[#allocation2] sm:$0xff] 0.0
    $region21: #{tpu_custom_call.1} parent=1 // pred_fallthru
      _
    %v57 = vld [vmem:[#allocation3] sm:$0xff]
    %v58 = vld [vmem:[#allocation3 + $0x8] sm:$0xff]
    %v59 = vld [vmem:[#allocation6] sm:$0xff]
    %v60 = vld [vmem:[#allocation6 + $0x8] sm:$0xff]
    %v61 = vsub.f32 %v59, %v57
    %v62 = vsub.f32 %v60, %v58
    %v63 = vand.u32 2147483647, %v61
    %v64 = vand.u32 2147483647, %v62
    %v65 = vld [vmem:[#allocation2] sm:$0xff]
    %v66 = vadd.f32 %v63, %v64
    %v67 = vadd.f32 %v65, %v66
    %68 = vst [vmem:[#allocation2] sm:$0xff] %v67
    // Predicated region
    $region22: #{tpu_custom_call.1} parent=1 // pred_check
      %p69 = pneg %p52
    $region23: #{tpu_custom_call.1} parent=1 // pred_check_branch
      %71 = sbr.rel (%p69) target = $region25
    $region24: #{tpu_custom_call.1} parent=1 // pred_region
      %v72 = vld [vmem:[#allocation2] sm:$0xff]
      %73 = vadd.xlane.f32.xlu0 %v72
      %v74 = vpop.xlane.xlu0 %73
      %v75 = vrot.slane %v74, 4
      %v76 = vadd.f32 %v74, %v75
      %v77 = vrot.slane %v76, 2
      %v78 = vadd.f32 %v76, %v77
      %v79 = vrot.slane %v78, 1
      %v80 = vadd.f32 %v78, %v79
      %s81 = vtos %v80
      %v82 = vstv %s81
      %v83 = vmul.f32 %v82, 0.00048828125
      %vm84 = vcmask 0
      %85 = vst.msk [vmem:[#allocation8] sm:$0x1] %vm84, %v83
    $region25: #{tpu_custom_call.1} parent=1 // pred_fallthru
      _
    // Predicated region
    $region26: #{tpu_custom_call.1} parent=1 // pred_check
      _
    $region27: #{tpu_custom_call.1} parent=1 // pred_check_branch
      %87 = sbr.rel (0) target = $region29
    $region28: #{tpu_custom_call.1} parent=1 // pred_region
      %s89 = ssub.s32 16, 16
      %90 = vsyncadd [#allocation5], %s89
      %s92 = sshll.u32 [#allocation8], 4
      %s93 = int_to_ptr.vmem [resolvable:$true] %s92
      %95 = dma.vmem_to_hbm [thread:$0]  %s93, 16, %s2, [#allocation5]
    $region29: #{tpu_custom_call.1} parent=1 // pred_fallthru
      _
    // Predicated region
    $region30: #{tpu_custom_call.1} parent=1 // pred_check
      _
    $region31: #{tpu_custom_call.1} parent=1 // pred_check_branch
      %97 = sbr.rel (0) target = $region33
    $region32: #{tpu_custom_call.1} parent=1 // pred_region
      %98 = dma.done [#allocation5], 16
    $region33: #{tpu_custom_call.1} parent=1 // pred_fallthru
      _
    %99 = vsyncpa [#allocation4], 1
    %100 = vsyncpa [#allocation7], 1
    %101 = vsyncpa [#allocation5], 1

</llo_original>
